<compile_context>
chip_gen: v7x
topology: tpu7x:2x2x1
jax: 0.10.0
libtpu: 0.0.40
codegen_flags: <defaults>
</compile_context>

<pallas_src>
import jax
import jax.numpy as jnp
from jax.experimental import pallas as pl
from jax.experimental.pallas import tpu as pltpu

_LANES = 128


def _hard_thresh_kernel(lam_ref, x_ref, o_ref):
    x = x_ref[...]
    lam = lam_ref[0, 0].astype(x.dtype)          # scalar read from SMEM
    keep = (jnp.abs(x) > lam).astype(x.dtype)    # 1.0 where kept, else 0.0
    # x * keep == sign(x) * Threshold(|x|, lam, 0) for all inputs, including
    # NaN (NaN * 0 == NaN), with only compare + cast + mul on the VPU.
    o_ref[...] = x * keep


def one_hard_thresh(x, lam, *, block_rows=4096):
    """Pallas TPU implementation of sign(x) * Threshold(|x|, lam, 0)."""
    orig_shape = x.shape
    dtype = x.dtype
    n = x.size

    # Minimal pad granularity so the (rows, 128) reshape is legal and rows is
    # a multiple of the native sublane tile (8 for f32, 16 bf16, 32 int8).
    sublanes = {4: 8, 2: 16, 1: 32}.get(jnp.dtype(dtype).itemsize, 8)
    tile = sublanes * _LANES
    n_pad = pl.cdiv(n, tile) * tile              # static python ints

    flat = jnp.ravel(x)
    if n_pad != n:                               # tiny (< tile elems) pad only
        flat = jnp.pad(flat, (0, n_pad - n))
    rows = n_pad // _LANES                       # multiple of `sublanes`
    x2d = flat.reshape(rows, _LANES)

    # ~2 MiB f32 blocks (4096 x 128 x 4B): big enough to amortize per-step
    # overhead, small enough that in+out x double-buffer (8 MiB) fits v5e's
    # 16 MiB default scoped VMEM. Clamp for small inputs; keep sublane-aligned.
    br = min(block_rows, rows)
    br = max(sublanes, (br // sublanes) * sublanes)
    grid = (pl.cdiv(rows, br),)                  # ragged last block is OK

    lam_arr = jnp.asarray(lam, dtype=jnp.float32).reshape(1, 1)

    out2d = pl.pallas_call(
        _hard_thresh_kernel,
        out_shape=jax.ShapeDtypeStruct((rows, _LANES), dtype),
        grid_spec=pltpu.PrefetchScalarGridSpec(
            num_scalar_prefetch=0,
            grid=grid,
            in_specs=[
                # lam lives untiled in SMEM -> runtime scalar, no recompile
                # when the threshold changes.
                pl.BlockSpec(memory_space=pltpu.MemorySpace.SMEM),
                pl.BlockSpec((br, _LANES), lambda i: (i, 0)),
            ],
            out_specs=pl.BlockSpec((br, _LANES), lambda i: (i, 0)),
        ),
        compiler_params=pltpu.CompilerParams(
            dimension_semantics=("parallel",),   # shard grid across TCs (v7x)
        ),
    )(lam_arr, x2d)

    if n_pad != n:
        return out2d.reshape(-1)[:n].reshape(orig_shape)
    return out2d.reshape(orig_shape)


def _reference(x, lam):
    ax = jnp.abs(x)
    return jnp.sign(x) * jnp.where(ax > lam, ax, 0.0)


if __name__ == "__main__":
    key = jax.random.PRNGKey(0)
    x = jax.random.normal(key, (2, 4, 16, 16), dtype=jnp.float32)
    lam = 0.5

    out = one_hard_thresh(x, lam)
    out = jax.block_until_ready(out)

    ref = _reference(x, lam)
    assert out.shape == x.shape and out.dtype == x.dtype
    assert jnp.allclose(out, ref, atol=1e-6), "mismatch vs reference"
    print("KERNEL_OK")
</pallas_src>

<mosaic_0001>
module attributes {stable_mosaic.version = 11 : i64} {
  func.func @_hard_thresh_kernel(%arg0: i32, %arg1: memref<1x1xf32, #tpu.memory_space<smem>>, %arg2: memref<16x128xf32, #tpu.memory_space<vmem>>, %arg3: memref<16x128xf32, #tpu.memory_space<vmem>>) attributes {dimension_semantics = [#tpu.dimension_semantics<parallel>], iteration_bounds = array<i64: 1>, scalar_prefetch = 0 : i64, scratch_operands = 0 : i64, tpu.core_type = #tpu.core_type<tc>, window_params = [{transform_indices = @transform_0, window_bounds = array<i64: 1, 1>}, {transform_indices = @transform_1, window_bounds = array<i64: 16, 128>}, {transform_indices = @transform_2, window_bounds = array<i64: 16, 128>}]} {
    %c0 = arith.constant 0 : index
    %c0_0 = arith.constant 0 : index
    %0 = vector.load %arg2[%c0, %c0_0] : memref<16x128xf32, #tpu.memory_space<vmem>>, vector<16x128xf32>
    %c0_1 = arith.constant 0 : index
    %c0_2 = arith.constant 0 : index
    %1 = memref.load %arg1[%c0_1, %c0_2] : memref<1x1xf32, #tpu.memory_space<smem>>
    %2 = math.absf %0 : vector<16x128xf32>
    %3 = vector.broadcast %1 : f32 to vector<16x128xf32>
    %4 = arith.cmpf ogt, %2, %3 : vector<16x128xf32>
    %5 = arith.extui %4 : vector<16x128xi1> to vector<16x128xi32>
    %6 = arith.sitofp %5 : vector<16x128xi32> to vector<16x128xf32>
    %7 = arith.mulf %0, %6 : vector<16x128xf32>
    %c0_3 = arith.constant 0 : index
    %c0_4 = arith.constant 0 : index
    %8 = vector.load %arg3[%c0_3, %c0_4] : memref<16x128xf32, #tpu.memory_space<vmem>>, vector<16x128xf32>
    tpu.vector_store %arg3[%c0_3, %c0_4], %7 {strides = array<i32>} : memref<16x128xf32, #tpu.memory_space<vmem>>, vector<16x128xf32>,
    return
  }
  func.func @transform_0(%arg0: i32) -> (i32, i32) {
    %c0_i32 = arith.constant 0 : i32
    %c0_i32_0 = arith.constant 0 : i32
    %c0_i32_1 = arith.constant 0 : i32
    return %c0_i32, %c0_i32_0 : i32, i32
  }
  func.func @transform_1(%arg0: i32) -> (i32, i32) {
    %c0_i32 = arith.constant 0 : i32
    %c0_i32_0 = arith.constant 0 : i32
    return %arg0, %c0_i32 : i32, i32
  }
  func.func @transform_2(%arg0: i32) -> (i32, i32) {
    %c0_i32 = arith.constant 0 : i32
    %c0_i32_0 = arith.constant 0 : i32
    return %arg0, %c0_i32 : i32, i32
  }
}

</mosaic_0001>

<llo_original>
// kernel: tpu_custom_call.1
$region0: #{tpu_custom_call.1}
  #allocation0 [shape = 'u32[]', space=smem, size = 0x4, offset = 0x4, fixed_abs, tag = 'smem constant byte address 0x4 - core index']
  #allocation1 [shape = 'u32[144,128]{1,0:T(1,128)}', space=vmem, size = 0x12000, scoped, tag = 'internal scratch']
  #allocation2 [shape = 'f32[1,1]{1,0:T(1,128)S(6)}', space=smem, size = 0x200, scoped, tag = 'scoped memory for tpu_custom_call.1']
  %s0 = inlined_call_operand.<no memory space> [shape: f32[1,1], index: 0, kind: input, shape index: {}]
  %s1 = inlined_call_operand.hbm [shape: f32[16,128], index: 1, kind: input, shape index: {}]
  %s2 = inlined_call_operand.hbm [shape: f32[16,128], index: 2, kind: output, shape index: {}]
  %s3 = sld [smem:[#allocation0]]
  $region22: #{tpu_custom_call.1} parent=0
    _
  %s5 = ssub.s32 1, %s3
  %s6 = scalar_select 0, %s5, %s3
  %7 = sst [smem:[#allocation2]] %s0
  $region1: #{tpu_custom_call.1} parent=0
    #allocation3 [shape = 'u8[8192]{0}', space=vmem, size = 0x2000, scoped, tag = 'input window, operand 1, single buffered']
    #allocation4 [shape = 's32[1]{0}', space=sflag, size = 0x4, scoped, tag = 'scoped memory for tpu_custom_call.1']
    #allocation5 [shape = 's32[1]{0}', space=sflag, size = 0x4, scoped, tag = 'scoped memory for tpu_custom_call.1']
    #allocation6 [shape = 'u8[8192]{0}', space=vmem, size = 0x2000, scoped, tag = 'output window, operand 0, single buffered']
    %8 = vsyncpa [#allocation4], 0
    %9 = vsyncpa [#allocation5], 0
    // Predicated region
    $region2: #{tpu_custom_call.1} parent=1 // pred_check
      _
    $region3: #{tpu_custom_call.1} parent=1 // pred_check_branch
      %11 = sbr.rel (0) target = $region5
    $region4: #{tpu_custom_call.1} parent=1 // pred_region
      _
    $region5: #{tpu_custom_call.1} parent=1 // pred_fallthru
      _
    // Predicated region
    $region6: #{tpu_custom_call.1} parent=1 // pred_check
      _
    $region7: #{tpu_custom_call.1} parent=1 // pred_check_branch
      %13 = sbr.rel (0) target = $region9
    $region8: #{tpu_custom_call.1} parent=1 // pred_region
      %s15 = ssub.s32 256, 256
      %16 = vsyncadd [#allocation4], %s15
      %s17 = sshll.u32 [#allocation3], 4
      %s18 = int_to_ptr.vmem [resolvable:$true] %s17
      %23 = dma.hbm_to_vmem [thread:$0]  %s1, 256, %s18, [#allocation4], 128, 128, 8
    $region9: #{tpu_custom_call.1} parent=1 // pred_fallthru
      _
    // Predicated region
    $region10: #{tpu_custom_call.1} parent=1 // pred_check
      _
    $region11: #{tpu_custom_call.1} parent=1 // pred_check_branch
      %25 = sbr.rel (0) target = $region13
    $region12: #{tpu_custom_call.1} parent=1 // pred_region
      %26 = dma.done [#allocation4], 256
    $region13: #{tpu_custom_call.1} parent=1 // pred_fallthru
      _
    %v27 = vld [vmem:[#allocation3] sm:$0xff]
    %v28 = vld [vmem:[#allocation3 + $0x8] sm:$0xff]
    %s29 = sld [smem:[#allocation2]]
    %v30 = vand.u32 2147483647, %v27
    %v31 = vand.u32 2147483647, %v28
    %v32 = vstv %s29
    %vm33 = vcmp.gt.f32.partialorder %v30, %v32
    %vm34 = vcmp.gt.f32.partialorder %v31, %v32
    %v35 = vsel %vm33, 1, 0
    %v36 = vsel %vm34, 1, 0
    %v37 = vcvt.s32.f32 %v35
    %v38 = vcvt.s32.f32 %v36
    %v39 = vmul.f32 %v27, %v37
    %v40 = vmul.f32 %v28, %v38
    %41 = vst [vmem:[#allocation6] sm:$0xff] %v39
    %42 = vst [vmem:[#allocation6 + $0x8] sm:$0xff] %v40
    // Predicated region
    $region14: #{tpu_custom_call.1} parent=1 // pred_check
      _
    $region15: #{tpu_custom_call.1} parent=1 // pred_check_branch
      %44 = sbr.rel (0) target = $region17
    $region16: #{tpu_custom_call.1} parent=1 // pred_region
      %s46 = ssub.s32 256, 256
      %47 = vsyncadd [#allocation5], %s46
      %s48 = sshll.u32 [#allocation6], 4
      %s49 = int_to_ptr.vmem [resolvable:$true] %s48
      %54 = dma.vmem_to_hbm [thread:$0]  %s49, 256, %s2, [#allocation5], 128, 128, 8
    $region17: #{tpu_custom_call.1} parent=1 // pred_fallthru
      _
    // Predicated region
    $region18: #{tpu_custom_call.1} parent=1 // pred_check
      _
    $region19: #{tpu_custom_call.1} parent=1 // pred_check_branch
      %56 = sbr.rel (0) target = $region21
    $region20: #{tpu_custom_call.1} parent=1 // pred_region
      %57 = dma.done [#allocation5], 256
    $region21: #{tpu_custom_call.1} parent=1 // pred_fallthru
      _
    %58 = vsyncpa [#allocation4], 1
    %59 = vsyncpa [#allocation5], 1

</llo_original>
